<compile_context>
chip_gen: v7x
topology: tpu7x:2x2x1
jax: 0.10.0
libtpu: 0.0.40
codegen_flags: <defaults>
</compile_context>

<pallas_src>
import jax
import jax.numpy as jnp
from jax.experimental import pallas as pl
from jax.experimental.pallas import tpu as pltpu


def _round_up(n: int, m: int) -> int:
    return ((n + m - 1) // m) * m


def _cdiv(a: int, b: int) -> int:
    return (a + b - 1) // b


def _choose_batch_tiling(batch: int, example_size: int, *, bytes_per_elem: int = 2,
                         budget_bytes: int = 6 * 1024 * 1024):
    """Pick (tile_rows, padded_batch).

    tile_rows is a multiple of 8 whose x block stays under a per-buffer VMEM budget
    (the pipeline double-buffers it: 2 x 6 MiB + resident weights fits v5e's 16 MiB
    default scoped VMEM). The batch is split EVENLY into n tiles so padding waste is
    bounded by < 8 rows per tile instead of up to a whole tile.
    """
    padded_b = _round_up(max(batch, 1), 8)
    max_tb = budget_bytes // max(1, example_size * bytes_per_elem)
    max_tb = max(8, min(4096, (max_tb // 8) * 8))
    if padded_b <= max_tb:
        return padded_b, padded_b                      # single tile
    num_tiles = _cdiv(padded_b, max_tb)
    tb = _round_up(_cdiv(padded_b, num_tiles), 8)       # <= max_tb (max_tb is a mult of 8)
    return tb, tb * num_tiles


def discriminator_kernel(x_ref, w1_ref, b1_ref, w2_ref, b2_ref, out_ref):
    # Hidden layer on the MXU: bf16 operands, f32 accumulation.
    h = jnp.dot(x_ref[...], w1_ref[...], preferred_element_type=jnp.float32)
    h = h + b1_ref[...]
    # LeakyReLU(0.2): max(h, 0.2*h) == where(h > 0, h, 0.2*h) for slope < 1; one vmul+vmax,
    # and the epilogue stays f32 (friendly to v5e's non-bf16 VPU).
    h = jnp.maximum(h, 0.2 * h)
    # Output layer (H -> 1) as a lane reduction: (TB, H) * (1, H) summed over lanes.
    # Avoids an N=1 MXU matmul that would use a single result column.
    o = jnp.sum(h * w2_ref[...], axis=-1, keepdims=True) + b2_ref[0]
    out_ref[...] = o.astype(out_ref.dtype)


def discriminator_forward(x, w1, b1, w2, b2, *, compute_dtype=jnp.bfloat16):
    """x: (B, E) f32; w1: (E, H); b1: (1, H); w2: (H, 1); b2: (1, 1).
    Returns squeezed logits, matching torch.squeeze(model(x))."""
    B, E = x.shape
    H = w1.shape[1]

    itemsize = jnp.dtype(compute_dtype).itemsize
    tb, padded_b = _choose_batch_tiling(B, E, bytes_per_elem=itemsize)
    if padded_b != B:
        x = jnp.pad(x, ((0, padded_b - B), (0, 0)))

    # Cast streamed / MXU operands to bf16 (halves HBM traffic); keep the rest f32.
    x_c = x.astype(compute_dtype)
    w1_c = w1.astype(compute_dtype)
    b1_r = b1.reshape(1, H).astype(jnp.float32)
    w2_row = w2.reshape(1, H).astype(jnp.float32)   # row layout for the lane reduce
    b2_s = b2.reshape(1).astype(jnp.float32)        # scalar -> SMEM

    grid = (padded_b // tb,)

    cost = pl.CostEstimate(
        flops=2 * padded_b * E * H + 4 * padded_b * H,          # matmul + epilogue
        transcendentals=0,
        bytes_accessed=(padded_b * E * itemsize                 # x stream
                        + E * H * itemsize + 2 * H * 4 + 4      # resident params
                        + padded_b * 4),                        # output
    )

    out = pl.pallas_call(
        discriminator_kernel,
        out_shape=jax.ShapeDtypeStruct((padded_b, 1), jnp.float32),
        grid=grid,
        in_specs=[
            pl.BlockSpec((tb, E), lambda i: (i, 0)),            # x: tiled over batch
            pl.BlockSpec((E, H), lambda i: (0, 0)),             # W1: resident
            pl.BlockSpec((1, H), lambda i: (0, 0)),             # b1: resident
            pl.BlockSpec((1, H), lambda i: (0, 0)),             # W2 row: resident
            pl.BlockSpec(memory_space=pltpu.MemorySpace.SMEM),  # b2 scalar
        ],
        out_specs=pl.BlockSpec((tb, 1), lambda i: (i, 0)),
        compiler_params=pltpu.CompilerParams(
            dimension_semantics=("parallel",),                  # v7x: shard over 2 TCs
            vmem_limit_bytes=32 * 1024 * 1024,                  # safe on v5e/v6e/v7x
        ),
        cost_estimate=cost,
    )(x_c, w1_c, b1_r, w2_row, b2_s)

    out = out[:B]
    # torch.squeeze removes all size-1 dims: (B, 1) -> (B,) (or scalar when B == 1).
    return jnp.squeeze(out)


def init_params(key, example_size, internal_size):
    """Deterministic parameter init (PyTorch nn.Linear-like uniform bounds)."""
    k1, k2, k3, k4 = jax.random.split(key, 4)
    bound1 = 1.0 / jnp.sqrt(example_size)
    bound2 = 1.0 / jnp.sqrt(internal_size)
    # Stored already-transposed vs. PyTorch: W1 (E, H), W2 (H, 1)
    w1 = jax.random.uniform(k1, (example_size, internal_size), jnp.float32,
                            -bound1, bound1)
    b1 = jax.random.uniform(k2, (1, internal_size), jnp.float32, -bound1, bound1)
    w2 = jax.random.uniform(k3, (internal_size, 1), jnp.float32, -bound2, bound2)
    b2 = jax.random.uniform(k4, (1, 1), jnp.float32, -bound2, bound2)
    return w1, b1, w2, b2


if __name__ == "__main__":
    example_size = 32
    internal_size = 16
    batch = 2

    key = jax.random.PRNGKey(0)
    kx, kp = jax.random.split(key)
    x = jax.random.normal(kx, (batch, example_size), jnp.float32)
    w1, b1, w2, b2 = init_params(kp, example_size, internal_size)

    out = discriminator_forward(x, w1, b1, w2, b2)
    out = jax.block_until_ready(out)
    assert out.shape == (batch,), out.shape

    # Reference 1: mirrors the kernel math (bf16 matmul operands, f32 accumulate).
    h = jnp.dot(x.astype(jnp.bfloat16), w1.astype(jnp.bfloat16),
                preferred_element_type=jnp.float32) + b1
    h = jnp.maximum(h, 0.2 * h)
    ref_bf16 = jnp.squeeze(h @ w2 + b2)
    assert jnp.allclose(out, ref_bf16, atol=1e-3, rtol=1e-3), (out, ref_bf16)

    # Reference 2: pure f32 PyTorch semantics; looser tolerance for the bf16 cast.
    h32 = x @ w1 + b1
    h32 = jnp.where(h32 > 0, h32, 0.2 * h32)
    ref_f32 = jnp.squeeze(h32 @ w2 + b2)
    assert jnp.allclose(out, ref_f32, atol=2e-2, rtol=2e-2), (out, ref_f32)

    print("KERNEL_OK")
</pallas_src>

<mosaic_0001>
module attributes {stable_mosaic.version = 11 : i64} {
  func.func @discriminator_kernel(%arg0: i32, %arg1: memref<8x32xbf16, #tpu.memory_space<vmem>>, %arg2: memref<32x16xbf16, #tpu.memory_space<vmem>>, %arg3: memref<1x16xf32, #tpu.memory_space<vmem>>, %arg4: memref<1x16xf32, #tpu.memory_space<vmem>>, %arg5: memref<1xf32, #tpu.memory_space<smem>>, %arg6: memref<8x1xf32, #tpu.memory_space<vmem>>) attributes {dimension_semantics = [#tpu.dimension_semantics<parallel>], iteration_bounds = array<i64: 1>, scalar_prefetch = 0 : i64, scratch_operands = 0 : i64, tpu.core_type = #tpu.core_type<tc>, window_params = [{transform_indices = @transform_0, window_bounds = array<i64: 8, 32>}, {pipeline_mode = #tpu.pipeline_mode<synchronous>, transform_indices = @transform_1, window_bounds = array<i64: 32, 16>}, {pipeline_mode = #tpu.pipeline_mode<synchronous>, transform_indices = @transform_2, window_bounds = array<i64: 1, 16>}, {pipeline_mode = #tpu.pipeline_mode<synchronous>, transform_indices = @transform_3, window_bounds = array<i64: 1, 16>}, {transform_indices = @transform_4, window_bounds = array<i64: 1>}, {transform_indices = @transform_5, window_bounds = array<i64: 8, 1>}]} {
    %c0 = arith.constant 0 : index
    %c0_0 = arith.constant 0 : index
    %0 = vector.load %arg1[%c0, %c0_0] : memref<8x32xbf16, #tpu.memory_space<vmem>>, vector<8x32xbf16>
    %c0_1 = arith.constant 0 : index
    %c0_2 = arith.constant 0 : index
    %1 = vector.load %arg2[%c0_1, %c0_2] : memref<32x16xbf16, #tpu.memory_space<vmem>>, vector<32x16xbf16>
    %cst = arith.constant dense<0.000000e+00> : vector<8x16xf32>
    %2 = tpu.matmul %0, %1, %cst {dimension_numbers = #tpu.dot_dimension_numbers<[1], [0], [0], [1], [0, 0, 1, 1], [], []>} : vector<8x32xbf16>, vector<32x16xbf16>, vector<8x16xf32> -> vector<8x16xf32>
    %c0_3 = arith.constant 0 : index
    %c0_4 = arith.constant 0 : index
    %3 = vector.load %arg3[%c0_3, %c0_4] : memref<1x16xf32, #tpu.memory_space<vmem>>, vector<1x16xf32>
    %4 = vector.broadcast %3 : vector<1x16xf32> to vector<8x16xf32>
    %5 = arith.addf %2, %4 : vector<8x16xf32>
    %cst_5 = arith.constant 2.000000e-01 : f32
    %6 = vector.broadcast %cst_5 : f32 to vector<8x16xf32>
    %7 = arith.mulf %6, %5 : vector<8x16xf32>
    %8 = arith.maximumf %5, %7 : vector<8x16xf32>
    %c0_6 = arith.constant 0 : index
    %c0_7 = arith.constant 0 : index
    %9 = vector.load %arg4[%c0_6, %c0_7] : memref<1x16xf32, #tpu.memory_space<vmem>>, vector<1x16xf32>
    %10 = vector.broadcast %9 : vector<1x16xf32> to vector<8x16xf32>
    %11 = arith.mulf %8, %10 : vector<8x16xf32>
    %cst_8 = arith.constant dense<0.000000e+00> : vector<8xf32>
    %12 = vector.multi_reduction <add>, %11, %cst_8 [1] : vector<8x16xf32> to vector<8xf32>
    %13 = vector.shape_cast %12 : vector<8xf32> to vector<8x1xf32>
    %c0_9 = arith.constant 0 : index
    %14 = memref.load %arg5[%c0_9] : memref<1xf32, #tpu.memory_space<smem>>
    %15 = vector.broadcast %14 : f32 to vector<8x1xf32>
    %16 = arith.addf %13, %15 : vector<8x1xf32>
    %c0_10 = arith.constant 0 : index
    %c0_11 = arith.constant 0 : index
    %17 = vector.load %arg6[%c0_10, %c0_11] : memref<8x1xf32, #tpu.memory_space<vmem>>, vector<8x1xf32>
    tpu.vector_store %arg6[%c0_10, %c0_11], %16 {strides = array<i32>} : memref<8x1xf32, #tpu.memory_space<vmem>>, vector<8x1xf32>,
    return
  }
  func.func @transform_0(%arg0: i32) -> (i32, i32) {
    %c0_i32 = arith.constant 0 : i32
    %c0_i32_0 = arith.constant 0 : i32
    return %arg0, %c0_i32 : i32, i32
  }
  func.func @transform_1(%arg0: i32) -> (i32, i32) {
    %c0_i32 = arith.constant 0 : i32
    %c0_i32_0 = arith.constant 0 : i32
    %c0_i32_1 = arith.constant 0 : i32
    return %c0_i32, %c0_i32_0 : i32, i32
  }
  func.func @transform_2(%arg0: i32) -> (i32, i32) {
    %c0_i32 = arith.constant 0 : i32
    %c0_i32_0 = arith.constant 0 : i32
    %c0_i32_1 = arith.constant 0 : i32
    return %c0_i32, %c0_i32_0 : i32, i32
  }
  func.func @transform_3(%arg0: i32) -> (i32, i32) {
    %c0_i32 = arith.constant 0 : i32
    %c0_i32_0 = arith.constant 0 : i32
    %c0_i32_1 = arith.constant 0 : i32
    return %c0_i32, %c0_i32_0 : i32, i32
  }
  func.func @transform_4(%arg0: i32) -> i32 {
    %c0_i32 = arith.constant 0 : i32
    %c0_i32_0 = arith.constant 0 : i32
    return %c0_i32 : i32
  }
  func.func @transform_5(%arg0: i32) -> (i32, i32) {
    %c0_i32 = arith.constant 0 : i32
    %c0_i32_0 = arith.constant 0 : i32
    return %arg0, %c0_i32 : i32, i32
  }
}

</mosaic_0001>

<llo_original>
// kernel: tpu_custom_call.1
$region0: #{tpu_custom_call.1}
  #allocation0 [shape = 'u32[]', space=smem, size = 0x4, offset = 0x4, fixed_abs, tag = 'smem constant byte address 0x4 - core index']
  #allocation1 [shape = 'u32[144,128]{1,0:T(1,128)}', space=vmem, size = 0x12000, scoped, tag = 'internal scratch']
  #allocation2 [shape = 'f32[1]{0:T(128)S(6)}', space=smem, size = 0x200, scoped, tag = 'scoped memory for tpu_custom_call.1']
  %s0 = inlined_call_operand.vmem [shape: bf16[8,32], index: 0, kind: input, shape index: {}]
  %s1 = inlined_call_operand.vmem [shape: bf16[32,16], index: 1, kind: input, shape index: {}]
  %s2 = inlined_call_operand.vmem [shape: f32[1,16], index: 2, kind: input, shape index: {}]
  %s3 = inlined_call_operand.vmem [shape: f32[1,16], index: 3, kind: input, shape index: {}]
  %s4 = inlined_call_operand.<no memory space> [shape: f32[1], index: 4, kind: input, shape index: {}]
  %s5 = inlined_call_operand.vmem [shape: f32[8,1], index: 5, kind: output, shape index: {}]
  %s6 = sld [smem:[#allocation0]]
  $region30: #{tpu_custom_call.1} parent=0
    _
  %s8 = ssub.s32 1, %s6
  %s9 = scalar_select 0, %s8, %s6
  %10 = sst [smem:[#allocation2]] %s4
  // Predicated region
  $region2: #{tpu_custom_call.1} parent=0 // pred_check
    _
  $region3: #{tpu_custom_call.1} parent=0 // pred_check_branch
    %12 = sbr.rel (0) target = $region5
  $region4: #{tpu_custom_call.1} parent=0 // pred_region
    _
  $region5: #{tpu_custom_call.1} parent=0 // pred_fallthru
    _
  // Predicated region
  $region6: #{tpu_custom_call.1} parent=0 // pred_check
    _
  $region7: #{tpu_custom_call.1} parent=0 // pred_check_branch
    %14 = sbr.rel (0) target = $region9
  $region8: #{tpu_custom_call.1} parent=0 // pred_region
    _
  $region9: #{tpu_custom_call.1} parent=0 // pred_fallthru
    _
  // Predicated region
  $region10: #{tpu_custom_call.1} parent=0 // pred_check
    _
  $region11: #{tpu_custom_call.1} parent=0 // pred_check_branch
    %16 = sbr.rel (0) target = $region13
  $region12: #{tpu_custom_call.1} parent=0 // pred_region
    _
  $region13: #{tpu_custom_call.1} parent=0 // pred_fallthru
    _
  // Predicated region
  $region14: #{tpu_custom_call.1} parent=0 // pred_check
    _
  $region15: #{tpu_custom_call.1} parent=0 // pred_check_branch
    %18 = sbr.rel (0) target = $region17
  $region16: #{tpu_custom_call.1} parent=0 // pred_region
    _
  $region17: #{tpu_custom_call.1} parent=0 // pred_fallthru
    _
  // Predicated region
  $region18: #{tpu_custom_call.1} parent=0 // pred_check
    _
  $region19: #{tpu_custom_call.1} parent=0 // pred_check_branch
    %20 = sbr.rel (0) target = $region21
  $region20: #{tpu_custom_call.1} parent=0 // pred_region
    _
  $region21: #{tpu_custom_call.1} parent=0 // pred_fallthru
    _
  %v22 = vld [vmem:[%s0] sm:$0xf]
  %v23 = vld [vmem:[%s1] sm:$0xf]
  %v24 = vld [vmem:[%s1 + $0x4] sm:$0xf]
  %v25 = vld [vmem:[%s1 + $0x8] sm:$0xf]
  %v26 = vld [vmem:[%s1 + $0xc] sm:$0xf]
  %v27 = vld [vmem:[%s2] sm:$0x1]
  %v29 = vlaneseq
  %v30 = vshrl.u32 %v29, 7
  %v31 = vsub.s32 0, %v30
  %v32 = vrot.slane %v27, %v31
  %v38 = vunpack.c.l.b16 %v23
  %v39 = vunpack.c.l.b16 %v24
  %v40 = vunpack.c.l.b16 %v25
  %v41 = vunpack.c.l.b16 %v26
  %v42 = vpack.c.b16 %v39, %v38
  %v43 = vpack.c.b16 %v41, %v40
  %vm46 = vcmask 261120
  %v48 = vsel %vm46, %v22, 0
  %50 = vmatprep.subr.bf16.mxu0 0
  %51 = vmatpush1.bf16.msra.mxu0 %v42
  %52 = vmatprep.subr.bf16.mxu0 0
  %53 = vmatpush1.bf16.msra.mxu0 %v43
  %54 = vmatprep.subr.bf16.mxu0 0
  %55 = vmatpush1.bf16.msra.mxu0 0
  %56 = vmatprep.subr.bf16.mxu0 0
  %57 = vmatpush1.bf16.msra.mxu0 0
  %58 = vmatprep.subr.bf16.mxu0 0
  %59 = vmatpush1.bf16.msra.mxu0 0
  %60 = vmatprep.subr.bf16.mxu0 0
  %61 = vmatpush1.bf16.msra.mxu0 0
  %62 = vmatprep.subr.bf16.mxu0 0
  %63 = vmatpush1.bf16.msra.mxu0 0
  %64 = vmatprep.subr.bf16.mxu0 0
  %65 = vmatpush1.bf16.msra.mxu0 0
  %66 = vmatprep.subr.bf16.mxu0 0
  %67 = vmatpush1.bf16.msra.mxu0 0
  %68 = vmatprep.subr.bf16.mxu0 0
  %69 = vmatpush1.bf16.msra.mxu0 0
  %70 = vmatprep.subr.bf16.mxu0 0
  %71 = vmatpush1.bf16.msra.mxu0 0
  %72 = vmatprep.subr.bf16.mxu0 0
  %73 = vmatpush1.bf16.msra.mxu0 0
  %74 = vmatprep.subr.bf16.mxu0 0
  %75 = vmatpush1.bf16.msra.mxu0 0
  %76 = vmatprep.subr.bf16.mxu0 0
  %77 = vmatpush1.bf16.msra.mxu0 0
  %78 = vmatprep.subr.bf16.mxu0 0
  %79 = vmatpush1.bf16.msra.mxu0 0
  %80 = vmatprep.subr.bf16.mxu0 0
  %81 = vmatpush1.bf16.msra.mxu0 0
  %82 = vmatprep.mubr.bf16.mxu0 0
  %83 = vmatmul.mubr.bf16.gmra.mrb[0].mxu0 %v48
  %v84 = vpop.f32.mrb[0].mxu0
  %v85 = vadd.f32 %v32, %v84
  %v86 = vpop.f32.mrb[0].mxu0
  %v87 = vpop.f32.mrb[0].mxu0
  %v88 = vpop.f32.mrb[0].mxu0
  %89 = vdwg.mxu0
  %v90 = vmul.f32 %v85, 0.2
  %v91 = vmax.f32 %v85, %v90
  %v92 = vld [vmem:[%s3] sm:$0x1]
  %v94 = vlaneseq
  %v95 = vshrl.u32 %v94, 7
  %v96 = vsub.s32 0, %v95
  %v97 = vrot.slane %v92, %v96
  %v99 = vmul.f32 %v91, %v97
  %vm100 = vcmask 130048
  %v101 = vsel %vm100, %v99, 0.0
  %102 = vadd.xlane.f32.xlu0 %v101
  %v103 = vpop.xlane.xlu0 %102
  %s104 = sld [smem:[#allocation2]]
  %v105 = vstv %s104
  %v106 = vadd.f32 %v103, %v105
  %vm107 = vcmask 7168
  %108 = vst.msk [vmem:[%s5] sm:$0xff] %vm107, %v106
  // Predicated region
  $region22: #{tpu_custom_call.1} parent=0 // pred_check
    _
  $region23: #{tpu_custom_call.1} parent=0 // pred_check_branch
    %110 = sbr.rel (0) target = $region25
  $region24: #{tpu_custom_call.1} parent=0 // pred_region
    _
  $region25: #{tpu_custom_call.1} parent=0 // pred_fallthru
    _
  // Predicated region
  $region26: #{tpu_custom_call.1} parent=0 // pred_check
    _
  $region27: #{tpu_custom_call.1} parent=0 // pred_check_branch
    %112 = sbr.rel (0) target = $region29
  $region28: #{tpu_custom_call.1} parent=0 // pred_region
    _
  $region29: #{tpu_custom_call.1} parent=0 // pred_fallthru
    _

</llo_original>
